<compile_context>
chip_gen: v5e
topology: v5e:2x2
jax: 0.10.0
libtpu: 0.0.40
codegen_flags: <defaults>
</compile_context>

<pallas_src>
import functools

import jax
import jax.numpy as jnp
from jax import lax
from jax.experimental import pallas as pl
from jax.experimental.pallas import tpu as pltpu

LRELU_SLOPE = 0.1
_HALO = 8     # fixed, 8-row aligned halo; covers dilation*(K-1)//2 + 1 <= 6
_LANE = 128   # channel lane padding target


def _lrelu(x):
    return jnp.where(x >= 0, x, LRELU_SLOPE * x)


def _round_up(x, m):
    return ((x + m - 1) // m) * m


# ----------------------------- fused stage kernel ----------------------------

def _fused_stage_kernel(xc_ref, xh_ref, w1_ref, b1_ref, w2_ref, b2_ref,
                        o_ref, xw_ref, xt_ref, im1_ref, im2_ref,
                        *, t_tile, halo, dilation, c_pad, t_real, mask_tail):
    """One ResBlock1 stage on one (time-tile, batch) grid point.

    xc_ref:  (1, T_TILE, Cp)     input tile (also the residual), f32
    xh_ref:  (1, 1, 2*halo, Cp)  [left | right] halo rows, already lrelu'd and
                                 cast to compute dtype (zeros at boundaries)
    w1_ref/w2_ref: (3*Cp, Cp)    im2col-packed weights, compute dtype
    b1_ref/b2_ref: (1, Cp)       f32 biases (zero in padded lanes)
    o_ref:   (1, T_TILE, Cp)     output tile
    xw_ref:  (T_TILE+2*halo, Cp) scratch: lrelu'd conv1 input window
    xt_ref:  (T_TILE+2, Cp)      scratch: lrelu'd conv1 output (conv2 input)
    im1_ref: (T_TILE+2, 3*Cp)    scratch: conv1 im2col LHS
    im2_ref: (T_TILE, 3*Cp)      scratch: conv2 im2col LHS
    """
    i = pl.program_id(0)                      # time-tile index
    cdt = xw_ref.dtype
    C = c_pad
    m = t_tile + 2

    # 1) assemble the leaky-relu'd conv1 input window (compute dtype)
    xc = xc_ref[0]                             # (T_TILE, Cp) f32, read once
    xw_ref[halo:halo + t_tile, :] = _lrelu(xc).astype(cdt)
    xw_ref[0:halo, :] = xh_ref[0, 0, 0:halo, :]
    xw_ref[halo + t_tile:halo + t_tile + halo, :] = xh_ref[0, 0, halo:2 * halo, :]

    # 2) conv1 (kernel=3, dilation=d) as ONE im2col matmul (m, 3C) @ (3C, C),
    #    computed over T_TILE + 2 rows (one extra row each side feeds conv2).
    s0 = halo - 1 - dilation
    s1 = halo - 1
    s2 = halo - 1 + dilation
    im1_ref[:, 0:C] = xw_ref[s0:s0 + m, :]
    im1_ref[:, C:2 * C] = xw_ref[s1:s1 + m, :]
    im1_ref[:, 2 * C:3 * C] = xw_ref[s2:s2 + m, :]
    acc = jnp.dot(im1_ref[...], w1_ref[...], preferred_element_type=jnp.float32)
    acc += b1_ref[...]

    #    lrelu, then zero every row whose global position lies outside the real
    #    sequence [0, t_real): this is conv2's zero padding at both sequence
    #    ends and over any time-padding tail rows.
    g = i * t_tile - 1 + lax.broadcasted_iota(jnp.int32, (m, 1), 0)
    xt = jnp.where((g >= 0) & (g < t_real), _lrelu(acc), 0.0)
    xt_ref[...] = xt.astype(cdt)

    # 3) conv2 (kernel=3, dilation=1) as ONE im2col matmul + bias + residual
    im2_ref[:, 0:C] = xt_ref[0:t_tile, :]
    im2_ref[:, C:2 * C] = xt_ref[1:t_tile + 1, :]
    im2_ref[:, 2 * C:3 * C] = xt_ref[2:t_tile + 2, :]
    acc2 = jnp.dot(im2_ref[...], w2_ref[...], preferred_element_type=jnp.float32)
    acc2 += b2_ref[...]
    acc2 += xc.astype(jnp.float32)

    if mask_tail:
        # zero padded tail rows so stacked stages keep seeing zeros beyond T
        g2 = i * t_tile + lax.broadcasted_iota(jnp.int32, (t_tile, 1), 0)
        acc2 = jnp.where(g2 < t_real, acc2, 0.0)

    o_ref[0] = acc2.astype(o_ref.dtype)


# --------------------------- VMEM-aware tile sizing ---------------------------

def _vmem_capacity_bytes():
    try:
        return int(pltpu.get_tpu_info().vmem_capacity_bytes)
    except Exception:
        return 64 * 1024 * 1024   # conservative (v7x per-TensorCore)


def _stage_vmem_bytes(tt, c_pad, cd_bytes):
    """Rough per-grid-step VMEM footprint of one fused stage."""
    per_row = c_pad * (
        8 + 8                 # f32 input + output tiles, double-buffered
        + cd_bytes * 8        # xw + xt + im1 + im2 scratch (~1+1+3+3)
        + 12                  # f32 accumulators / compiler temporaries
    )
    fixed = 2 * (3 * c_pad * c_pad * cd_bytes) * 2   # w1+w2, double-buffered
    fixed += 4 * c_pad * (4 + cd_bytes) + (2 << 20)  # halo/biases + slack
    return tt * per_row + fixed


def _choose_t_tile(t_total, c_pad, cd_bytes, t_tile=None):
    t_ceil8 = _round_up(t_total, 8)
    if t_tile is not None:
        return min(_round_up(max(int(t_tile), 8), 8), t_ceil8)
    budget = int(_vmem_capacity_bytes() * 0.6)
    chosen = 256
    for cand in (2048, 1792, 1536, 1280, 1024, 768, 512, 384, 256,
                 128, 64, 32, 16, 8):
        if _stage_vmem_bytes(cand, c_pad, cd_bytes) <= budget:
            chosen = cand
            break
    return min(chosen, t_ceil8)


def _vmem_limit_bytes(tt, c_pad, cd_bytes):
    cap = _vmem_capacity_bytes()
    est = _stage_vmem_bytes(tt, c_pad, cd_bytes)
    return int(min(max(int(est * 1.5), 32 * 1024 * 1024), int(cap * 0.85)))


# ------------------------------- fused stage call ------------------------------

def _fused_res_stage(x_ntc, w1, b1, w2, b2, dilation, *,
                     t_tile, t_real, vmem_limit_bytes):
    """y = conv2(lrelu(conv1(lrelu(x)))) + x on a channel/time padded slab.

    x_ntc: (B, T_pad, Cp) f32, T_pad % t_tile == 0, Cp % 128 == 0.
    w*:    (3*Cp, Cp) im2col-packed weights (compute dtype); b*: (1, Cp) f32.
    """
    B, T_pad, Cp = x_ntc.shape
    assert T_pad % t_tile == 0 and Cp % _LANE == 0
    n_t = T_pad // t_tile
    cd = w1.dtype
    H = _HALO
    assert dilation + 1 <= H, "halo too small for this dilation"

    # Tiny halo side-array: [prev tile's last H rows | next tile's first H
    # rows], pre-lrelu'd and cast to the compute dtype, zeros at boundaries.
    if n_t == 1:
        halo = jnp.zeros((B, 1, 2 * H, Cp), cd)
    else:
        xr = x_ntc.reshape(B, n_t, t_tile, Cp)
        z = jnp.zeros((B, 1, H, Cp), cd)
        left = jnp.concatenate(
            [z, _lrelu(xr[:, :-1, t_tile - H:, :]).astype(cd)], axis=1)
        right = jnp.concatenate(
            [_lrelu(xr[:, 1:, 0:H, :]).astype(cd), z], axis=1)
        halo = jnp.concatenate([left, right], axis=2)   # (B, n_t, 2H, Cp)

    kern = functools.partial(
        _fused_stage_kernel, t_tile=t_tile, halo=H, dilation=dilation,
        c_pad=Cp, t_real=t_real, mask_tail=(T_pad != t_real))

    return pl.pallas_call(
        kern,
        out_shape=jax.ShapeDtypeStruct((B, T_pad, Cp), x_ntc.dtype),
        grid_spec=pltpu.PrefetchScalarGridSpec(
            num_scalar_prefetch=0,
            grid=(n_t, B),   # time axis leads: better megacore balance on v7x
            in_specs=[
                pl.BlockSpec((1, t_tile, Cp), lambda i, b: (b, i, 0)),
                pl.BlockSpec((1, 1, 2 * H, Cp), lambda i, b: (b, i, 0, 0)),
                pl.BlockSpec((3 * Cp, Cp), lambda i, b: (0, 0)),
                pl.BlockSpec((1, Cp), lambda i, b: (0, 0)),
                pl.BlockSpec((3 * Cp, Cp), lambda i, b: (0, 0)),
                pl.BlockSpec((1, Cp), lambda i, b: (0, 0)),
            ],
            out_specs=pl.BlockSpec((1, t_tile, Cp), lambda i, b: (b, i, 0)),
            scratch_shapes=[
                pltpu.VMEM((t_tile + 2 * H, Cp), cd),
                pltpu.VMEM((t_tile + 2, Cp), cd),
                pltpu.VMEM((t_tile + 2, 3 * Cp), cd),
                pltpu.VMEM((t_tile, 3 * Cp), cd),
            ],
        ),
        compiler_params=pltpu.CompilerParams(
            dimension_semantics=("parallel", "parallel"),
            vmem_limit_bytes=vmem_limit_bytes,
        ),
    )(x_ntc, halo, w1, b1, w2, b2)


# ----------------------------- ResBlock1 module ------------------------------

def init_resblock1_params(key, channels, kernel_size=3, dilation=(1, 3, 5)):
    """Synthetic params mirroring init_weights (normal std=0.01).

    Stored in PyTorch Conv1d layout: weights (Cout, Cin, K), biases (Cout,).
    (weight_norm is folded into the effective conv weight.)
    """
    params = {"convs1": [], "convs2": [], "dilation": tuple(dilation)}
    for _ in range(len(dilation)):
        key, k1, k2, k3, k4 = jax.random.split(key, 5)
        w1 = 0.01 * jax.random.normal(k1, (channels, channels, kernel_size), jnp.float32)
        b1 = 0.01 * jax.random.normal(k2, (channels,), jnp.float32)
        w2 = 0.01 * jax.random.normal(k3, (channels, channels, kernel_size), jnp.float32)
        b2 = 0.01 * jax.random.normal(k4, (channels,), jnp.float32)
        params["convs1"].append((w1, b1))
        params["convs2"].append((w2, b2))
    return params


def _pack_w(w_oik, c_pad, cd):
    """torch (Cout, Cin, K) -> (K, Cin, Cout) -> zero-pad channels -> (K*Cp, Cp)."""
    co, ci, k = w_oik.shape
    w = jnp.transpose(w_oik, (2, 1, 0))
    w = jnp.pad(w, ((0, 0), (0, c_pad - ci), (0, c_pad - co)))
    return w.reshape(k * c_pad, c_pad).astype(cd)


def _pack_b(b, c_pad):
    return jnp.pad(b, (0, c_pad - b.shape[0])).reshape(1, c_pad).astype(jnp.float32)


def prepare_resblock1_params(params, compute_dtype=jnp.bfloat16):
    """One-time conversion (hoisted out of the forward pass): transpose to
    im2col layout, zero-pad channels to a multiple of 128 lanes, cast weights
    to the MXU compute dtype."""
    c = params["convs1"][0][0].shape[0]
    c_pad = max(_round_up(c, _LANE), _LANE)
    prep = {"dilation": params["dilation"], "channels": c, "c_pad": c_pad,
            "compute_dtype": compute_dtype, "convs1": [], "convs2": []}
    for (w1, b1), (w2, b2) in zip(params["convs1"], params["convs2"]):
        prep["convs1"].append((_pack_w(w1, c_pad, compute_dtype), _pack_b(b1, c_pad)))
        prep["convs2"].append((_pack_w(w2, c_pad, compute_dtype), _pack_b(b2, c_pad)))
    return prep


def resblock1_forward_ntc(prepared, x_ntc, *, t_tile=None):
    """Channels-last forward: x (B, T, C) -> (B, T, C).  Use this entry point
    directly if the surrounding generator is kept channels-last end-to-end."""
    B, T, C = x_ntc.shape
    assert C == prepared["channels"]
    Cp = prepared["c_pad"]
    cd = prepared["compute_dtype"]
    cd_bytes = jnp.dtype(cd).itemsize

    tt = _choose_t_tile(T, Cp, cd_bytes, t_tile)
    n_t = -(-T // tt)
    T_pad = n_t * tt
    vmem_limit = _vmem_limit_bytes(tt, Cp, cd_bytes)

    x = x_ntc
    if T_pad != T or Cp != C:
        x = jnp.pad(x, ((0, 0), (0, T_pad - T), (0, Cp - C)))

    for (w1, b1), (w2, b2), d in zip(prepared["convs1"], prepared["convs2"],
                                     prepared["dilation"]):
        x = _fused_res_stage(x, w1, b1, w2, b2, d, t_tile=tt, t_real=T,
                             vmem_limit_bytes=vmem_limit)

    if T_pad != T or Cp != C:
        x = x[:, :T, :C]
    return x


def resblock1_forward(prepared, x_nct, *, t_tile=None):
    """Forward matching ResBlock1.forward. Input/output layout: (B, C, T)."""
    x = jnp.transpose(x_nct, (0, 2, 1))           # -> (B, T, C)
    y = resblock1_forward_ntc(prepared, x, t_tile=t_tile)
    return jnp.transpose(y, (0, 2, 1))            # -> (B, C, T)


# ------------------------------ plain-JAX reference --------------------------

def _conv1d_ref(x_nct, w_oik, b, dilation):
    pad = dilation * (w_oik.shape[-1] - 1) // 2
    y = lax.conv_general_dilated(
        x_nct, w_oik, window_strides=(1,), padding=[(pad, pad)],
        rhs_dilation=(dilation,),
        dimension_numbers=("NCW", "OIW", "NCW"))
    return y + b[None, :, None]


def resblock1_ref(params, x_nct):
    x = x_nct
    for (w1, b1), (w2, b2), d in zip(params["convs1"], params["convs2"],
                                     params["dilation"]):
        xt = _lrelu(x)
        xt = _conv1d_ref(xt, w1, b1, d)
        xt = _lrelu(xt)
        xt = _conv1d_ref(xt, w2, b2, 1)
        x = xt + x
    return x


if __name__ == "__main__":
    key = jax.random.PRNGKey(0)
    # T=100 is deliberately NOT a tile multiple -> exercises time padding +
    # tail masking; C=16 exercises the 128-lane channel padding path.
    B, C, T = 2, 16, 100
    kx, kp = jax.random.split(key)
    x = jax.random.normal(kx, (B, C, T), jnp.float32)

    params = init_resblock1_params(kp, channels=C, kernel_size=3,
                                   dilation=(1, 3, 5))
    ref = resblock1_ref(params, x)

    # f32 compute path, small explicit tile: tight check of fusion / tiling /
    # halo / boundary / padding handling across 4 time tiles.
    p32 = prepare_resblock1_params(params, compute_dtype=jnp.float32)
    out32 = jax.block_until_ready(resblock1_forward(p32, x, t_tile=32))
    assert out32.shape == (B, C, T)
    assert jnp.allclose(out32, ref, atol=1e-5, rtol=1e-5), "f32 mismatch vs reference"

    # bf16 MXU path with explicit small tile (multi-tile halos in bf16).
    pbf = prepare_resblock1_params(params, compute_dtype=jnp.bfloat16)
    outbf_t = jax.block_until_ready(resblock1_forward(pbf, x, t_tile=32))
    err_t = float(jnp.max(jnp.abs(outbf_t.astype(jnp.float32) - ref)))
    assert err_t < 2e-2, f"bf16 (tiled) mismatch vs reference: {err_t}"

    # bf16 MXU path with automatic, VMEM-aware tile selection (production default).
    outbf = jax.block_until_ready(resblock1_forward(pbf, x))
    assert outbf.shape == (B, C, T)
    err = float(jnp.max(jnp.abs(outbf.astype(jnp.float32) - ref)))
    assert err < 2e-2, f"bf16 (auto) mismatch vs reference: {err}"

    print("KERNEL_OK")
</pallas_src>

<mosaic_0001>
module attributes {stable_mosaic.version = 11 : i64} {
  func.func @_fused_stage_kernel(%arg0: i32, %arg1: i32, %arg2: memref<1x32x128xf32, #tpu.memory_space<vmem>>, %arg3: memref<1x1x16x128xf32, #tpu.memory_space<vmem>>, %arg4: memref<384x128xf32, #tpu.memory_space<vmem>>, %arg5: memref<1x128xf32, #tpu.memory_space<vmem>>, %arg6: memref<384x128xf32, #tpu.memory_space<vmem>>, %arg7: memref<1x128xf32, #tpu.memory_space<vmem>>, %arg8: memref<1x32x128xf32, #tpu.memory_space<vmem>>, %arg9: memref<48x128xf32, #tpu.memory_space<vmem>>, %arg10: memref<34x128xf32, #tpu.memory_space<vmem>>, %arg11: memref<34x384xf32, #tpu.memory_space<vmem>>, %arg12: memref<32x384xf32, #tpu.memory_space<vmem>>) attributes {dimension_semantics = [#tpu.dimension_semantics<parallel>, #tpu.dimension_semantics<parallel>], iteration_bounds = array<i64: 4, 2>, scalar_prefetch = 0 : i64, scratch_operands = 4 : i64, tpu.core_type = #tpu.core_type<tc>, window_params = [{transform_indices = @transform_0, window_bounds = array<i64: 1, 32, 128>}, {transform_indices = @transform_1, window_bounds = array<i64: 1, 1, 16, 128>}, {pipeline_mode = #tpu.pipeline_mode<synchronous>, transform_indices = @transform_2, window_bounds = array<i64: 384, 128>}, {pipeline_mode = #tpu.pipeline_mode<synchronous>, transform_indices = @transform_3, window_bounds = array<i64: 1, 128>}, {pipeline_mode = #tpu.pipeline_mode<synchronous>, transform_indices = @transform_4, window_bounds = array<i64: 384, 128>}, {pipeline_mode = #tpu.pipeline_mode<synchronous>, transform_indices = @transform_5, window_bounds = array<i64: 1, 128>}, {transform_indices = @transform_6, window_bounds = array<i64: 1, 32, 128>}]} {
    %c0 = arith.constant 0 : index
    %c0_0 = arith.constant 0 : index
    %c0_1 = arith.constant 0 : index
    %0 = vector.load %arg2[%c0, %c0_0, %c0_1] : memref<1x32x128xf32, #tpu.memory_space<vmem>>, vector<1x32x128xf32>
    %1 = vector.shape_cast %0 : vector<1x32x128xf32> to vector<32x128xf32>
    %cst = arith.constant 0.000000e+00 : f32
    %2 = vector.broadcast %cst : f32 to vector<32x128xf32>
    %3 = arith.cmpf oge, %1, %2 : vector<32x128xf32>
    %cst_2 = arith.constant 1.000000e-01 : f32
    %4 = vector.broadcast %cst_2 : f32 to vector<32x128xf32>
    %5 = arith.mulf %4, %1 : vector<32x128xf32>
    %6 = arith.select %3, %1, %5 : vector<32x128xi1>, vector<32x128xf32>
    %c8 = arith.constant 8 : index
    %c0_3 = arith.constant 0 : index
    %7 = vector.load %arg9[%c8, %c0_3] : memref<48x128xf32, #tpu.memory_space<vmem>>, vector<32x128xf32>
    tpu.vector_store %arg9[%c8, %c0_3], %6 {strides = array<i32>} : memref<48x128xf32, #tpu.memory_space<vmem>>, vector<32x128xf32>,
    %c0_4 = arith.constant 0 : index
    %c0_5 = arith.constant 0 : index
    %c0_6 = arith.constant 0 : index
    %c0_7 = arith.constant 0 : index
    %8 = vector.load %arg3[%c0_4, %c0_5, %c0_6, %c0_7] : memref<1x1x16x128xf32, #tpu.memory_space<vmem>>, vector<1x1x8x128xf32>
    %9 = vector.shape_cast %8 : vector<1x1x8x128xf32> to vector<8x128xf32>
    %c0_8 = arith.constant 0 : index
    %c0_9 = arith.constant 0 : index
    %10 = vector.load %arg9[%c0_8, %c0_9] : memref<48x128xf32, #tpu.memory_space<vmem>>, vector<8x128xf32>
    tpu.vector_store %arg9[%c0_8, %c0_9], %9 {strides = array<i32>} : memref<48x128xf32, #tpu.memory_space<vmem>>, vector<8x128xf32>,
    %c0_10 = arith.constant 0 : index
    %c0_11 = arith.constant 0 : index
    %c8_12 = arith.constant 8 : index
    %c0_13 = arith.constant 0 : index
    %11 = vector.load %arg3[%c0_10, %c0_11, %c8_12, %c0_13] : memref<1x1x16x128xf32, #tpu.memory_space<vmem>>, vector<1x1x8x128xf32>
    %12 = vector.shape_cast %11 : vector<1x1x8x128xf32> to vector<8x128xf32>
    %c40 = arith.constant 40 : index
    %c0_14 = arith.constant 0 : index
    %13 = vector.load %arg9[%c40, %c0_14] : memref<48x128xf32, #tpu.memory_space<vmem>>, vector<8x128xf32>
    tpu.vector_store %arg9[%c40, %c0_14], %12 {strides = array<i32>} : memref<48x128xf32, #tpu.memory_space<vmem>>, vector<8x128xf32>,
    %c6 = arith.constant 6 : index
    %c0_15 = arith.constant 0 : index
    %14 = vector.load %arg9[%c6, %c0_15] : memref<48x128xf32, #tpu.memory_space<vmem>>, vector<34x128xf32>
    %c0_16 = arith.constant 0 : index
    %c0_17 = arith.constant 0 : index
    %15 = vector.load %arg11[%c0_16, %c0_17] : memref<34x384xf32, #tpu.memory_space<vmem>>, vector<34x128xf32>
    tpu.vector_store %arg11[%c0_16, %c0_17], %14 {strides = array<i32>} : memref<34x384xf32, #tpu.memory_space<vmem>>, vector<34x128xf32>,
    %c7 = arith.constant 7 : index
    %c0_18 = arith.constant 0 : index
    %16 = vector.load %arg9[%c7, %c0_18] : memref<48x128xf32, #tpu.memory_space<vmem>>, vector<34x128xf32>
    %c0_19 = arith.constant 0 : index
    %c128 = arith.constant 128 : index
    %17 = vector.load %arg11[%c0_19, %c128] : memref<34x384xf32, #tpu.memory_space<vmem>>, vector<34x128xf32>
    tpu.vector_store %arg11[%c0_19, %c128], %16 {strides = array<i32>} : memref<34x384xf32, #tpu.memory_space<vmem>>, vector<34x128xf32>,
    %c8_20 = arith.constant 8 : index
    %c0_21 = arith.constant 0 : index
    %18 = vector.load %arg9[%c8_20, %c0_21] : memref<48x128xf32, #tpu.memory_space<vmem>>, vector<34x128xf32>
    %c0_22 = arith.constant 0 : index
    %c256 = arith.constant 256 : index
    %19 = vector.load %arg11[%c0_22, %c256] : memref<34x384xf32, #tpu.memory_space<vmem>>, vector<34x128xf32>
    tpu.vector_store %arg11[%c0_22, %c256], %18 {strides = array<i32>} : memref<34x384xf32, #tpu.memory_space<vmem>>, vector<34x128xf32>,
    %c0_23 = arith.constant 0 : index
    %c0_24 = arith.constant 0 : index
    %20 = vector.load %arg11[%c0_23, %c0_24] : memref<34x384xf32, #tpu.memory_space<vmem>>, vector<34x384xf32>
    %c0_25 = arith.constant 0 : index
    %c0_26 = arith.constant 0 : index
    %21 = vector.load %arg4[%c0_25, %c0_26] : memref<384x128xf32, #tpu.memory_space<vmem>>, vector<384x128xf32>
    %cst_27 = arith.constant dense<0.000000e+00> : vector<34x128xf32>
    %22 = tpu.matmul %20, %21, %cst_27 {dimension_numbers = #tpu.dot_dimension_numbers<[1], [0], [0], [1], [0, 0, 1, 1], [], []>} : vector<34x384xf32>, vector<384x128xf32>, vector<34x128xf32> -> vector<34x128xf32>
    %c0_28 = arith.constant 0 : index
    %c0_29 = arith.constant 0 : index
    %23 = vector.load %arg5[%c0_28, %c0_29] : memref<1x128xf32, #tpu.memory_space<vmem>>, vector<1x128xf32>
    %24 = vector.broadcast %23 : vector<1x128xf32> to vector<34x128xf32>
    %25 = arith.addf %22, %24 : vector<34x128xf32>
    %c32_i32 = arith.constant 32 : i32
    %26 = arith.muli %arg0, %c32_i32 : i32
    %c1_i32 = arith.constant 1 : i32
    %27 = arith.subi %26, %c1_i32 : i32
    %28 = tpu.iota {dimensions = array<i32: 0>} : vector<34x1xi32>
    %29 = vector.broadcast %27 : i32 to vector<34x1xi32>
    %30 = arith.addi %29, %28 : vector<34x1xi32>
    %c0_i32 = arith.constant 0 : i32
    %31 = vector.broadcast %c0_i32 : i32 to vector<34x1xi32>
    %32 = arith.cmpi sge, %30, %31 : vector<34x1xi32>
    %c100_i32 = arith.constant 100 : i32
    %33 = vector.broadcast %c100_i32 : i32 to vector<34x1xi32>
    %34 = arith.cmpi slt, %30, %33 : vector<34x1xi32>
    %35 = arith.andi %32, %34 : vector<34x1xi1>
    %cst_30 = arith.constant 0.000000e+00 : f32
    %36 = vector.broadcast %cst_30 : f32 to vector<34x128xf32>
    %37 = arith.cmpf oge, %25, %36 : vector<34x128xf32>
    %cst_31 = arith.constant 1.000000e-01 : f32
    %38 = vector.broadcast %cst_31 : f32 to vector<34x128xf32>
    %39 = arith.mulf %38, %25 : vector<34x128xf32>
    %40 = arith.select %37, %25, %39 : vector<34x128xi1>, vector<34x128xf32>
    %cst_32 = arith.constant 0.000000e+00 : f32
    %41 = vector.shape_cast %35 : vector<34x1xi1> to vector<34x1xi1>
    %42 = vector.broadcast %41 : vector<34x1xi1> to vector<34x128xi1>
    %43 = vector.broadcast %cst_32 : f32 to vector<34x128xf32>
    %44 = arith.select %42, %40, %43 : vector<34x128xi1>, vector<34x128xf32>
    %c0_33 = arith.constant 0 : index
    %c0_34 = arith.constant 0 : index
    %45 = vector.load %arg10[%c0_33, %c0_34] : memref<34x128xf32, #tpu.memory_space<vmem>>, vector<34x128xf32>
    tpu.vector_store %arg10[%c0_33, %c0_34], %44 {strides = array<i32>} : memref<34x128xf32, #tpu.memory_space<vmem>>, vector<34x128xf32>,
    %c0_35 = arith.constant 0 : index
    %c0_36 = arith.constant 0 : index
    %46 = vector.load %arg10[%c0_35, %c0_36] : memref<34x128xf32, #tpu.memory_space<vmem>>, vector<32x128xf32>
    %c0_37 = arith.constant 0 : index
    %c0_38 = arith.constant 0 : index
    %47 = vector.load %arg12[%c0_37, %c0_38] : memref<32x384xf32, #tpu.memory_space<vmem>>, vector<32x128xf32>
    tpu.vector_store %arg12[%c0_37, %c0_38], %46 {strides = array<i32>} : memref<32x384xf32, #tpu.memory_space<vmem>>, vector<32x128xf32>,
    %c1 = arith.constant 1 : index
    %c0_39 = arith.constant 0 : index
    %48 = vector.load %arg10[%c1, %c0_39] : memref<34x128xf32, #tpu.memory_space<vmem>>, vector<32x128xf32>
    %c0_40 = arith.constant 0 : index
    %c128_41 = arith.constant 128 : index
    %49 = vector.load %arg12[%c0_40, %c128_41] : memref<32x384xf32, #tpu.memory_space<vmem>>, vector<32x128xf32>
    tpu.vector_store %arg12[%c0_40, %c128_41], %48 {strides = array<i32>} : memref<32x384xf32, #tpu.memory_space<vmem>>, vector<32x128xf32>,
    %c2 = arith.constant 2 : index
    %c0_42 = arith.constant 0 : index
    %50 = vector.load %arg10[%c2, %c0_42] : memref<34x128xf32, #tpu.memory_space<vmem>>, vector<32x128xf32>
    %c0_43 = arith.constant 0 : index
    %c256_44 = arith.constant 256 : index
    %51 = vector.load %arg12[%c0_43, %c256_44] : memref<32x384xf32, #tpu.memory_space<vmem>>, vector<32x128xf32>
    tpu.vector_store %arg12[%c0_43, %c256_44], %50 {strides = array<i32>} : memref<32x384xf32, #tpu.memory_space<vmem>>, vector<32x128xf32>,
    %c0_45 = arith.constant 0 : index
    %c0_46 = arith.constant 0 : index
    %52 = vector.load %arg12[%c0_45, %c0_46] : memref<32x384xf32, #tpu.memory_space<vmem>>, vector<32x384xf32>
    %c0_47 = arith.constant 0 : index
    %c0_48 = arith.constant 0 : index
    %53 = vector.load %arg6[%c0_47, %c0_48] : memref<384x128xf32, #tpu.memory_space<vmem>>, vector<384x128xf32>
    %cst_49 = arith.constant dense<0.000000e+00> : vector<32x128xf32>
    %54 = tpu.matmul %52, %53, %cst_49 {dimension_numbers = #tpu.dot_dimension_numbers<[1], [0], [0], [1], [0, 0, 1, 1], [], []>} : vector<32x384xf32>, vector<384x128xf32>, vector<32x128xf32> -> vector<32x128xf32>
    %c0_50 = arith.constant 0 : index
    %c0_51 = arith.constant 0 : index
    %55 = vector.load %arg7[%c0_50, %c0_51] : memref<1x128xf32, #tpu.memory_space<vmem>>, vector<1x128xf32>
    %56 = vector.broadcast %55 : vector<1x128xf32> to vector<32x128xf32>
    %57 = arith.addf %54, %56 : vector<32x128xf32>
    %58 = arith.addf %57, %1 : vector<32x128xf32>
    %c32_i32_52 = arith.constant 32 : i32
    %59 = arith.muli %arg0, %c32_i32_52 : i32
    %60 = tpu.iota {dimensions = array<i32: 0>} : vector<32x1xi32>
    %61 = vector.broadcast %59 : i32 to vector<32x1xi32>
    %62 = arith.addi %61, %60 : vector<32x1xi32>
    %c100_i32_53 = arith.constant 100 : i32
    %63 = vector.broadcast %c100_i32_53 : i32 to vector<32x1xi32>
    %64 = arith.cmpi slt, %62, %63 : vector<32x1xi32>
    %cst_54 = arith.constant 0.000000e+00 : f32
    %65 = vector.shape_cast %64 : vector<32x1xi1> to vector<32x1xi1>
    %66 = vector.broadcast %65 : vector<32x1xi1> to vector<32x128xi1>
    %67 = vector.broadcast %cst_54 : f32 to vector<32x128xf32>
    %68 = arith.select %66, %58, %67 : vector<32x128xi1>, vector<32x128xf32>
    %c0_55 = arith.constant 0 : index
    %c0_56 = arith.constant 0 : index
    %c0_57 = arith.constant 0 : index
    %69 = vector.load %arg8[%c0_55, %c0_56, %c0_57] : memref<1x32x128xf32, #tpu.memory_space<vmem>>, vector<1x32x128xf32>
    %70 = vector.shape_cast %69 : vector<1x32x128xf32> to vector<32x128xf32>
    %71 = vector.shape_cast %68 : vector<32x128xf32> to vector<1x32x128xf32>
    tpu.vector_store %arg8[%c0_55, %c0_56, %c0_57], %71 {strides = array<i32>} : memref<1x32x128xf32, #tpu.memory_space<vmem>>, vector<1x32x128xf32>,
    return
  }
  func.func @transform_0(%arg0: i32, %arg1: i32) -> (i32, i32, i32) {
    %c0_i32 = arith.constant 0 : i32
    %c0_i32_0 = arith.constant 0 : i32
    return %arg1, %arg0, %c0_i32 : i32, i32, i32
  }
  func.func @transform_1(%arg0: i32, %arg1: i32) -> (i32, i32, i32, i32) {
    %c0_i32 = arith.constant 0 : i32
    %c0_i32_0 = arith.constant 0 : i32
    %c0_i32_1 = arith.constant 0 : i32
    return %arg1, %arg0, %c0_i32, %c0_i32_0 : i32, i32, i32, i32
  }
  func.func @transform_2(%arg0: i32, %arg1: i32) -> (i32, i32) {
    %c0_i32 = arith.constant 0 : i32
    %c0_i32_0 = arith.constant 0 : i32
    %c0_i32_1 = arith.constant 0 : i32
    return %c0_i32, %c0_i32_0 : i32, i32
  }
  func.func @transform_3(%arg0: i32, %arg1: i32) -> (i32, i32) {
    %c0_i32 = arith.constant 0 : i32
    %c0_i32_0 = arith.constant 0 : i32
    %c0_i32_1 = arith.constant 0 : i32
    return %c0_i32, %c0_i32_0 : i32, i32
  }
  func.func @transform_4(%arg0: i32, %arg1: i32) -> (i32, i32) {
    %c0_i32 = arith.constant 0 : i32
    %c0_i32_0 = arith.constant 0 : i32
    %c0_i32_1 = arith.constant 0 : i32
    return %c0_i32, %c0_i32_0 : i32, i32
  }
  func.func @transform_5(%arg0: i32, %arg1: i32) -> (i32, i32) {
    %c0_i32 = arith.constant 0 : i32
    %c0_i32_0 = arith.constant 0 : i32
    %c0_i32_1 = arith.constant 0 : i32
    return %c0_i32, %c0_i32_0 : i32, i32
  }
  func.func @transform_6(%arg0: i32, %arg1: i32) -> (i32, i32, i32) {
    %c0_i32 = arith.constant 0 : i32
    %c0_i32_0 = arith.constant 0 : i32
    return %arg1, %arg0, %c0_i32 : i32, i32, i32
  }
}

</mosaic_0001>

<llo_original>
// kernel: tpu_custom_call.1
$region0: #{tpu_custom_call.1}
  #allocation0 [shape = 'u32[]', space=smem, size = 0x4, offset = 0x4, fixed_abs, tag = 'smem constant byte address 0x4 - core index']
  #allocation1 [shape = 'u32[72,128]{1,0:T(1,128)}', space=vmem, size = 0x9000, scoped, tag = 'internal scratch']
  #allocation2 [shape = 'f32[48,128]{1,0:T(8,128)}', space=vmem, size = 0x6000, scoped, tag = 'scratch operand']
  #allocation3 [shape = 'f32[34,128]{1,0:T(8,128)}', space=vmem, size = 0x5000, scoped, tag = 'scratch operand']
  #allocation4 [shape = 'f32[34,384]{1,0:T(8,128)}', space=vmem, size = 0xf000, scoped, tag = 'scratch operand']
  #allocation5 [shape = 'f32[32,384]{1,0:T(8,128)}', space=vmem, size = 0xc000, scoped, tag = 'scratch operand']
  %s0 = inlined_call_operand.hbm [shape: f32[2,128,128], index: 0, kind: input, shape index: {}]
  %s1 = inlined_call_operand.hbm [shape: f32[2,4,16,128], index: 1, kind: input, shape index: {}]
  %s2 = inlined_call_operand.hbm [shape: f32[384,128], index: 2, kind: input, shape index: {}]
  %s3 = inlined_call_operand.vmem [shape: f32[1,128], index: 3, kind: input, shape index: {}]
  %s4 = inlined_call_operand.hbm [shape: f32[384,128], index: 4, kind: input, shape index: {}]
  %s5 = inlined_call_operand.vmem [shape: f32[1,128], index: 5, kind: input, shape index: {}]
  %s6 = inlined_call_operand.hbm [shape: f32[2,128,128], index: 6, kind: output, shape index: {}]
  %s7 = sld [smem:[#allocation0]]
  $region73: #{tpu_custom_call.1} parent=0
    _
  %s9 = ssub.s32 1, %s7
  %s10 = scalar_select 0, %s9, %s7
  $region1: #{tpu_custom_call.1} parent=0
    #allocation6 [shape = 'u8[32768]{0}', space=vmem, size = 0x8000, scoped, tag = 'input window, operand 0']
    #allocation7 [shape = 's32[2]{0}', space=sflag, size = 0x8, scoped, tag = 'scoped memory for tpu_custom_call.1']
    #allocation8 [shape = 's32[2]{0}', space=sflag, size = 0x8, scoped, tag = 'scoped memory for tpu_custom_call.1']
    #allocation9 [shape = 'u8[16384]{0}', space=vmem, size = 0x4000, scoped, tag = 'input window, operand 1']
    #allocation10 [shape = 's32[2]{0}', space=sflag, size = 0x8, scoped, tag = 'scoped memory for tpu_custom_call.1']
    #allocation11 [shape = 'u8[196608]{0}', space=vmem, size = 0x30000, scoped, tag = 'input window, operand 2, single buffered']
    #allocation12 [shape = 'u8[196608]{0}', space=vmem, size = 0x30000, scoped, tag = 'input window, operand 4, single buffered']
    #allocation13 [shape = 's32[1]{0}', space=sflag, size = 0x4, scoped, tag = 'scoped memory for tpu_custom_call.1']
    #allocation14 [shape = 'u8[32768]{0}', space=vmem, size = 0x8000, scoped, tag = 'output window, operand 0']
    %11 = vsyncpa [#allocation7], 0
    %s12 = scalar_lea.sflag [#allocation7], 1
    %13 = vsyncpa %s12, 0
    %14 = vsyncpa [#allocation10], 0
    %s15 = scalar_lea.sflag [#allocation10], 1
    %16 = vsyncpa %s15, 0
    %17 = vsyncpa [#allocation13], 0
    %18 = vsyncpa [#allocation8], 0
    %s19 = scalar_lea.sflag [#allocation8], 1
    %20 = vsyncpa %s19, 0
    loop: start=0, step=1, limit=10
    $region2: #{tpu_custom_call.1} parent=1 // loop_pre_header
      _
    $region3: #{tpu_custom_call.1} parent=1 // loop_header
      %s22 = sphi 0, %s26
      %p23 = scmp.ge.s32.totalorder %s22, 10
      %s29 = sphi 0, %s41
      %s30 = sphi 0, %s37
      %s31 = sphi 0, %s29
      %s32 = sphi 0, %s30
      %s33 = sphi 0, %s31
      %s34 = sphi 0, %s32
      %s46 = sphi 0, %s48
      %s49 = sphi 0, %s46
      %s50 = sphi 0, %s49
      %s66 = sphi 0, %s50
      %s74 = sphi 0, %s76
      %s77 = sphi 0, %s74
      %s78 = sphi 0, %s77
      %s94 = sphi 0, %s78
      %s98 = sphi 0, %s98
      %s100 = sphi 0, %s98
      %s101 = sphi 0, %s100
      %s115 = sphi 0, %s101
      %s119 = sphi 0, %s119
      %s121 = sphi 0, %s119
      %s122 = sphi 0, %s121
      %s136 = sphi 0, %s122
      %s140 = sphi 0, %s140
      %s142 = sphi 0, %s140
      %s143 = sphi 0, %s142
      %s157 = sphi 0, %s143
      %s161 = sphi 0, %s161
      %s163 = sphi 0, %s161
      %s164 = sphi 0, %s163
      %s178 = sphi 0, %s164
      %s186 = sphi 0, %s188
      %s189 = sphi 0, %s186
      %s190 = sphi 0, %s189
      %s206 = sphi 0, %s190
    $region4: #{tpu_custom_call.1} parent=1 // loop_header_branch
      %25 = sbr.rel (%p23) target = $region8
    $region5: #{tpu_custom_call.1} parent=1 // loop_body
      %s27 = ssub.s32 %s22, 1
      %s28 = ssub.s32 %s22, 2
      %s35 = sadd.s32 1, %s30
      %p36 = scmp.ge.s32.totalorder %s35, 2
      %s37 = scalar_select %p36, 0, %s35
      %s38 = sadd.s32 1, %s29
      %s39 = scalar_select %p36, %s38, %s29
      %p40 = scmp.ge.s32.totalorder %s39, 4
      %s41 = scalar_select %p40, 0, %s39
      %s42 = ssub.s32 %s30, %s37
      %s43 = ssub.s32 %s29, %s41
      %s44 = sor.u32 %s42, %s43
      %p45 = scmp.eq.s32.totalorder %s44, 0
      %s47 = sadd.s32 %s46, 1
      %s48 = scalar_select %p45, %s46, %s47
      %p51 = pneg %p45
      %p52 = scmp.eq.s32.totalorder %s22, 7
      %p53 = por %p51, %p52
      %p54 = scmp.ne.s32.totalorder %s46, %s49
      %p55 = scmp.eq.s32.totalorder %s22, 0
      %p56 = por %p54, %p55
      %p57 = scmp.ne.s32.totalorder %s46, %s49
      %p58 = scmp.eq.s32.totalorder %s27, 7
      %p59 = por %p57, %p58
      %p60 = scmp.ne.s32.totalorder %s49, %s50
      %p61 = scmp.eq.s32.totalorder %s27, 0
      %p62 = por %p60, %p61
      %p63 = scmp.ne.s32.totalorder %s49, %s50
      %p64 = scmp.eq.s32.totalorder %s28, 7
      %p65 = por %p63, %p64
      %p67 = scmp.ne.s32.totalorder %s50, %s66
      %p68 = scmp.eq.s32.totalorder %s28, 0
      %p69 = por %p67, %p68
      %s70 = ssub.s32 %s30, %s37
      %s71 = ssub.s32 %s29, %s41
      %s72 = sor.u32 %s70, %s71
      %p73 = scmp.eq.s32.totalorder %s72, 0
      %s75 = sadd.s32 %s74, 1
      %s76 = scalar_select %p73, %s74, %s75
      %p79 = pneg %p73
      %p80 = scmp.eq.s32.totalorder %s22, 7
      %p81 = por %p79, %p80
      %p82 = scmp.ne.s32.totalorder %s74, %s77
      %p83 = scmp.eq.s32.totalorder %s22, 0
      %p84 = por %p82, %p83
      %p85 = scmp.ne.s32.totalorder %s74, %s77
      %p86 = scmp.eq.s32.totalorder %s27, 7
      %p87 = por %p85, %p86
      %p88 = scmp.ne.s32.totalorder %s77, %s78
      %p89 = scmp.eq.s32.totalorder %s27, 0
      %p90 = por %p88, %p89
      %p91 = scmp.ne.s32.totalorder %s77, %s78
      %p92 = scmp.eq.s32.totalorder %s28, 7
      %p93 = por %p91, %p92
      %p95 = scmp.ne.s32.totalorder %s78, %s94
      %p96 = scmp.eq.s32.totalorder %s28, 0
      %p97 = por %p95, %p96
      %s99 = sadd.s32 %s98, 1
      %p102 = scmp.eq.s32.totalorder %s22, 7
      %p103 = scmp.ne.s32.totalorder %s98, %s100
      %p104 = scmp.eq.s32.totalorder %s22, 0
      %p105 = por %p103, %p104
      %p106 = scmp.ne.s32.totalorder %s98, %s100
      %p107 = scmp.eq.s32.totalorder %s27, 7
      %p108 = por %p106, %p107
      %p109 = scmp.ne.s32.totalorder %s100, %s101
      %p110 = scmp.eq.s32.totalorder %s27, 0
      %p111 = por %p109, %p110
      %p112 = scmp.ne.s32.totalorder %s100, %s101
      %p113 = scmp.eq.s32.totalorder %s28, 7
      %p114 = por %p112, %p113
      %p116 = scmp.ne.s32.totalorder %s101, %s115
      %p117 = scmp.eq.s32.totalorder %s28, 0
      %p118 = por %p116, %p117
      %s120 = sadd.s32 %s119, 1
      %p123 = scmp.eq.s32.totalorder %s22, 7
      %p124 = scmp.ne.s32.totalorder %s119, %s121
      %p125 = scmp.eq.s32.totalorder %s22, 0
      %p126 = por %p124, %p125
      %p127 = scmp.ne.s32.totalorder %s119, %s121
      %p128 = scmp.eq.s32.totalorder %s27, 7
      %p129 = por %p127, %p128
      %p130 = scmp.ne.s32.totalorder %s121, %s122
      %p131 = scmp.eq.s32.totalorder %s27, 0
      %p132 = por %p130, %p131
      %p133 = scmp.ne.s32.totalorder %s121, %s122
      %p134 = scmp.eq.s32.totalorder %s28, 7
      %p135 = por %p133, %p134
      %p137 = scmp.ne.s32.totalorder %s122, %s136
      %p138 = scmp.eq.s32.totalorder %s28, 0
      %p139 = por %p137, %p138
      %s141 = sadd.s32 %s140, 1
      %p144 = scmp.eq.s32.totalorder %s22, 7
      %p145 = scmp.ne.s32.totalorder %s140, %s142
      %p146 = scmp.eq.s32.totalorder %s22, 0
      %p147 = por %p145, %p146
      %p148 = scmp.ne.s32.totalorder %s140, %s142
      %p149 = scmp.eq.s32.totalorder %s27, 7
      %p150 = por %p148, %p149
      %p151 = scmp.ne.s32.totalorder %s142, %s143
      %p152 = scmp.eq.s32.totalorder %s27, 0
      %p153 = por %p151, %p152
      %p154 = scmp.ne.s32.totalorder %s142, %s143
      %p155 = scmp.eq.s32.totalorder %s28, 7
      %p156 = por %p154, %p155
      %p158 = scmp.ne.s32.totalorder %s143, %s157
      %p159 = scmp.eq.s32.totalorder %s28, 0
      %p160 = por %p158, %p159
      %s162 = sadd.s32 %s161, 1
      %p165 = scmp.eq.s32.totalorder %s22, 7
      %p166 = scmp.ne.s32.totalorder %s161, %s163
      %p167 = scmp.eq.s32.totalorder %s22, 0
      %p168 = por %p166, %p167
      %p169 = scmp.ne.s32.totalorder %s161, %s163
      %p170 = scmp.eq.s32.totalorder %s27, 7
      %p171 = por %p169, %p170
      %p172 = scmp.ne.s32.totalorder %s163, %s164
      %p173 = scmp.eq.s32.totalorder %s27, 0
      %p174 = por %p172, %p173
      %p175 = scmp.ne.s32.totalorder %s163, %s164
      %p176 = scmp.eq.s32.totalorder %s28, 7
      %p177 = por %p175, %p176
      %p179 = scmp.ne.s32.totalorder %s164, %s178
      %p180 = scmp.eq.s32.totalorder %s28, 0
      %p181 = por %p179, %p180
      %s182 = ssub.s32 %s30, %s37
      %s183 = ssub.s32 %s29, %s41
      %s184 = sor.u32 %s182, %s183
      %p185 = scmp.eq.s32.totalorder %s184, 0
      %s187 = sadd.s32 %s186, 1
      %s188 = scalar_select %p185, %s186, %s187
      %p191 = pneg %p185
      %p192 = scmp.eq.s32.totalorder %s22, 7
      %p193 = por %p191, %p192
      %p194 = scmp.ne.s32.totalorder %s186, %s189
      %p195 = scmp.eq.s32.totalorder %s22, 0
      %p196 = por %p194, %p195
      %p197 = scmp.ne.s32.totalorder %s186, %s189
      %p198 = scmp.eq.s32.totalorder %s27, 7
      %p199 = por %p197, %p198
      %p200 = scmp.ne.s32.totalorder %s189, %s190
      %p201 = scmp.eq.s32.totalorder %s27, 0
      %p202 = por %p200, %p201
      %p203 = scmp.ne.s32.totalorder %s189, %s190
      %p204 = scmp.eq.s32.totalorder %s28, 7
      %p205 = por %p203, %p204
      %p207 = scmp.ne.s32.totalorder %s190, %s206
      %p208 = scmp.eq.s32.totalorder %s28, 0
      %p209 = por %p207, %p208
      %p210 = scmp.le.s32.totalorder 1, %s22
      %p211 = scmp.lt.s32.totalorder %s22, 9
      %p212 = pnand %p210, %p211
      %p213 = pneg %p212
      // Predicated region
      $region9: #{tpu_custom_call.1} parent=5 // pred_check
        _
      $region10: #{tpu_custom_call.1} parent=5 // pred_check_branch
        %215 = sbr.rel (%p212) target = $region12
      $region11: #{tpu_custom_call.1} parent=5 // pred_region
        %s216 = ssub.s32 %s22, 1
        // Predicated region
        $region13: #{tpu_custom_call.1} parent=11 // pred_check
          %p217 = pneg %p111
        $region14: #{tpu_custom_call.1} parent=11 // pred_check_branch
          %219 = sbr.rel (%p217) target = $region16
        $region15: #{tpu_custom_call.1} parent=11 // pred_region
          %221 = vsyncadd [#allocation10], 0
          %s222 = sshll.u32 %s2, 4
          %s223 = int_to_ptr.hbm [resolvable:$true] %s222
          %s224 = sshll.u32 [#allocation11], 4
          %s225 = int_to_ptr.vmem [resolvable:$true] %s224
          %230 = dma.hbm_to_vmem [thread:$0]  %s223, 6144, %s225, [#allocation10], 128, 128, 8
        $region16: #{tpu_custom_call.1} parent=11 // pred_fallthru
          _
        // Predicated region
        $region17: #{tpu_custom_call.1} parent=11 // pred_check
          %p231 = pneg %p132
        $region18: #{tpu_custom_call.1} parent=11 // pred_check_branch
          %233 = sbr.rel (%p231) target = $region20
        $region19: #{tpu_custom_call.1} parent=11 // pred_region
          _
        $region20: #{tpu_custom_call.1} parent=11 // pred_fallthru
          _
        // Predicated region
        $region21: #{tpu_custom_call.1} parent=11 // pred_check
          %p234 = pneg %p153
        $region22: #{tpu_custom_call.1} parent=11 // pred_check_branch
          %236 = sbr.rel (%p234) target = $region24
        $region23: #{tpu_custom_call.1} parent=11 // pred_region
          %238 = vsyncadd [#allocation13], 0
          %s239 = sshll.u32 %s4, 4
          %s240 = int_to_ptr.hbm [resolvable:$true] %s239
          %s241 = sshll.u32 [#allocation12], 4
          %s242 = int_to_ptr.vmem [resolvable:$true] %s241
          %247 = dma.hbm_to_vmem [thread:$0]  %s240, 6144, %s242, [#allocation13], 128, 128, 8
        $region24: #{tpu_custom_call.1} parent=11 // pred_fallthru
          _
        // Predicated region
        $region25: #{tpu_custom_call.1} parent=11 // pred_check
          %p248 = pneg %p174
        $region26: #{tpu_custom_call.1} parent=11 // pred_check_branch
          %250 = sbr.rel (%p248) target = $region28
        $region27: #{tpu_custom_call.1} parent=11 // pred_region
          _
        $region28: #{tpu_custom_call.1} parent=11 // pred_fallthru
          _
      $region12: #{tpu_custom_call.1} parent=5 // pred_fallthru
        _
      %p251 = scmp.lt.s32.totalorder %s22, 8
      // Predicated region
      $region29: #{tpu_custom_call.1} parent=5 // pred_check
        %p252 = pneg %p251
      $region30: #{tpu_custom_call.1} parent=5 // pred_check_branch
        %254 = sbr.rel (%p252) target = $region32
      $region31: #{tpu_custom_call.1} parent=5 // pred_region
        // Predicated region
        $region33: #{tpu_custom_call.1} parent=31 // pred_check
          %p255 = pneg %p56
        $region34: #{tpu_custom_call.1} parent=31 // pred_check_branch
          %257 = sbr.rel (%p255) target = $region36
        $region35: #{tpu_custom_call.1} parent=31 // pred_region
          %s258 = sand.u32 %s46, 1
          %s259 = scalar_lea.sflag [#allocation7], %s258
          %s260 = sand.u32 %s46, 1
          %s261 = smul.addr %s260, 32
          %s262 = scalar_lea.vmem [#allocation6], %s261
          %s263 = smul.u32 4, %s29
          %265 = vsyncadd %s259, 0
          %s266 = smul.addr %s30, 16
          %s267 = sadd.s32 %s263, %s266
          %s268 = smul.addr %s267, 8
          %s269 = scalar_lea.hbm %s0, %s268
          %s270 = sshll.u32 %s269, 4
          %s271 = int_to_ptr.hbm [resolvable:$true] %s270
          %s272 = sshll.u32 %s262, 4
          %s273 = int_to_ptr.vmem [resolvable:$true] %s272
          %278 = dma.hbm_to_vmem [thread:$0]  %s271, 512, %s273, %s259, 128, 128, 8
        $region36: #{tpu_custom_call.1} parent=31 // pred_fallthru
          _
        // Predicated region
        $region37: #{tpu_custom_call.1} parent=31 // pred_check
          %p279 = pneg %p84
        $region38: #{tpu_custom_call.1} parent=31 // pred_check_branch
          %281 = sbr.rel (%p279) target = $region40
        $region39: #{tpu_custom_call.1} parent=31 // pred_region
          %s282 = sand.u32 %s22, 1
          %s283 = scalar_lea.sflag [#allocation10], %s282
          %s284 = sand.u32 %s74, 1
          %s285 = smul.addr %s284, 16
          %s286 = scalar_lea.vmem [#allocation9], %s285
          %288 = vsyncadd %s283, 0
          %s289 = smul.addr %s29, 2
          %s290 = smul.addr %s30, 8
          %s291 = sadd.s32 %s289, %s290
          %s292 = smul.addr %s291, 8
          %s293 = scalar_lea.hbm %s1, %s292
          %s294 = sshll.u32 %s293, 4
          %s295 = int_to_ptr.hbm [resolvable:$true] %s294
          %s296 = sshll.u32 %s286, 4
          %s297 = int_to_ptr.vmem [resolvable:$true] %s296
          %302 = dma.hbm_to_vmem [thread:$0]  %s295, 256, %s297, %s283, 128, 128, 8
        $region40: #{tpu_custom_call.1} parent=31 // pred_fallthru
          _
      $region32: #{tpu_custom_call.1} parent=5 // pred_fallthru
        _
      %p303 = scmp.le.s32.totalorder 1, %s22
      %p304 = scmp.lt.s32.totalorder %s22, 9
      %p305 = pnand %p303, %p304
      %p306 = pneg %p305
      // Predicated region
      $region41: #{tpu_custom_call.1} parent=5 // pred_check
        _
      $region42: #{tpu_custom_call.1} parent=5 // pred_check_branch
        %308 = sbr.rel (%p305) target = $region44
      $region43: #{tpu_custom_call.1} parent=5 // pred_region
        %s309 = ssub.s32 %s22, 1
        %s310 = sand.u32 %s49, 1
        %s311 = scalar_lea.sflag [#allocation7], %s310
        %s312 = sand.u32 %s49, 1
        %s313 = smul.addr %s312, 32
        %s314 = scalar_lea.vmem [#allocation6], %s313
        // Predicated region
        $region45: #{tpu_custom_call.1} parent=43 // pred_check
          %p315 = pneg %p62
        $region46: #{tpu_custom_call.1} parent=43 // pred_check_branch
          %317 = sbr.rel (%p315) target = $region48
        $region47: #{tpu_custom_call.1} parent=43 // pred_region
          %319 = dma.done %s311, 512
        $region48: #{tpu_custom_call.1} parent=43 // pred_fallthru
          _
        %s320 = sand.u32 %s27, 1
        %s321 = scalar_lea.sflag [#allocation10], %s320
        %s322 = sand.u32 %s77, 1
        %s323 = smul.addr %s322, 16
        %s324 = scalar_lea.vmem [#allocation9], %s323
        // Predicated region
        $region49: #{tpu_custom_call.1} parent=43 // pred_check
          %p325 = pneg %p90
        $region50: #{tpu_custom_call.1} parent=43 // pred_check_branch
          %327 = sbr.rel (%p325) target = $region52
        $region51: #{tpu_custom_call.1} parent=43 // pred_region
          %329 = dma.done %s321, 256
        $region52: #{tpu_custom_call.1} parent=43 // pred_fallthru
          _
        // Predicated region
        $region53: #{tpu_custom_call.1} parent=43 // pred_check
          %p330 = pneg %p111
        $region54: #{tpu_custom_call.1} parent=43 // pred_check_branch
          %332 = sbr.rel (%p330) target = $region56
        $region55: #{tpu_custom_call.1} parent=43 // pred_region
          %334 = dma.done [#allocation10], 6144
        $region56: #{tpu_custom_call.1} parent=43 // pred_fallthru
          _
        // Predicated region
        $region57: #{tpu_custom_call.1} parent=43 // pred_check
          %p335 = pneg %p153
        $region58: #{tpu_custom_call.1} parent=43 // pred_check_branch
          %337 = sbr.rel (%p335) target = $region60
        $region59: #{tpu_custom_call.1} parent=43 // pred_region
          %339 = dma.done [#allocation13], 6144
        $region60: #{tpu_custom_call.1} parent=43 // pred_fallthru
          _
        %s340 = sand.u32 %s49, 1
        %s341 = scalar_lea.sflag [#allocation7], %s340
        %s342 = sand.u32 %s49, 1
        %s343 = smul.addr %s342, 32
        %s344 = scalar_lea.vmem [#allocation6], %s343
        %p345 = pneg %p62
        %p346 = pneg %p59
        %s347 = sand.u32 %s27, 1
        %s348 = scalar_lea.sflag [#allocation10], %s347
        %s349 = sand.u32 %s77, 1
        %s350 = smul.addr %s349, 16
        %s351 = scalar_lea.vmem [#allocation9], %s350
        %p352 = pneg %p90
        %p353 = pneg %p87
        %p354 = pneg %p111
        %p355 = pneg %p108
        %p356 = pneg %p132
        %p357 = pneg %p129
        %p358 = pneg %p153
        %p359 = pneg %p150
        %p360 = pneg %p174
        %p361 = pneg %p171
        %p362 = pneg %p202
        %p363 = pneg %p199
        %s364 = sand.u32 %s189, 1
        %s365 = scalar_lea.sflag [#allocation8], %s364
        %s366 = sand.u32 %s189, 1
        %s367 = smul.addr %s366, 32
        %s368 = scalar_lea.vmem [#allocation14], %s367
        %s369 = smul.u32 4, %s31
        %s370 = smul.u32 4, %s31
        %v371 = vld [vmem:[%s314] sm:$0xff]
        %v372 = vld [vmem:[%s314 + $0x8] sm:$0xff]
        %v373 = vld [vmem:[%s314 + $0x10] sm:$0xff]
        %v374 = vld [vmem:[%s314 + $0x18] sm:$0xff]
        %vm375 = vcmp.ge.f32.partialorder %v371, 0.0
        %vm376 = vcmp.ge.f32.partialorder %v372, 0.0
        %vm377 = vcmp.ge.f32.partialorder %v373, 0.0
        %vm378 = vcmp.ge.f32.partialorder %v374, 0.0
        %v379 = vmul.f32 %v371, 0.1
        %v380 = vmul.f32 %v372, 0.1
        %v381 = vmul.f32 %v373, 0.1
        %v382 = vmul.f32 %v374, 0.1
        %v383 = vsel %vm375, %v371, %v379
        %v384 = vsel %vm376, %v372, %v380
        %v385 = vsel %vm377, %v373, %v381
        %v386 = vsel %vm378, %v374, %v382
        %387 = vst [vmem:[#allocation2 + $0x8] sm:$0xff] %v383
        %388 = vst [vmem:[#allocation2 + $0x10] sm:$0xff] %v384
        %389 = vst [vmem:[#allocation2 + $0x18] sm:$0xff] %v385
        %390 = vst [vmem:[#allocation2 + $0x20] sm:$0xff] %v386
        %v391 = vld [vmem:[%s324] sm:$0xff]
        %392 = vst [vmem:[#allocation2] sm:$0xff] %v391
        %v393 = vld [vmem:[%s324 + $0x8] sm:$0xff]
        %394 = vst [vmem:[#allocation2 + $0x28] sm:$0xff] %v393
        %v395 = vld [vmem:[#allocation2 + $0x6] sm:$0xff]
        %v396 = vld [vmem:[#allocation2 + $0xe] sm:$0xff]
        %v397 = vld [vmem:[#allocation2 + $0x16] sm:$0xff]
        %v398 = vld [vmem:[#allocation2 + $0x1e] sm:$0xff]
        %v399 = vld [vmem:[#allocation2 + $0x26] sm:$0x3]
        %400 = vst [vmem:[#allocation4] sm:$0xff] %v395
        %401 = vst [vmem:[#allocation4 + $0x18] sm:$0xff] %v396
        %402 = vst [vmem:[#allocation4 + $0x30] sm:$0xff] %v397
        %403 = vst [vmem:[#allocation4 + $0x48] sm:$0xff] %v398
        %404 = vst [vmem:[#allocation4 + $0x60] sm:$0x3] %v399
        %v405 = vld [vmem:[#allocation2 + $0x7] sm:$0xff]
        %v406 = vld [vmem:[#allocation2 + $0xf] sm:$0xff]
        %v407 = vld [vmem:[#allocation2 + $0x17] sm:$0xff]
        %v408 = vld [vmem:[#allocation2 + $0x1f] sm:$0xff]
        %v409 = vld [vmem:[#allocation2 + $0x27] sm:$0x3]
        %410 = vst [vmem:[#allocation4 + $0x8] sm:$0xff] %v405
        %411 = vst [vmem:[#allocation4 + $0x20] sm:$0xff] %v406
        %412 = vst [vmem:[#allocation4 + $0x38] sm:$0xff] %v407
        %413 = vst [vmem:[#allocation4 + $0x50] sm:$0xff] %v408
        %414 = vst [vmem:[#allocation4 + $0x68] sm:$0x3] %v409
        %v415 = vld [vmem:[#allocation2 + $0x8] sm:$0xff]
        %v416 = vld [vmem:[#allocation2 + $0x10] sm:$0xff]
        %v417 = vld [vmem:[#allocation2 + $0x18] sm:$0xff]
        %v418 = vld [vmem:[#allocation2 + $0x20] sm:$0xff]
        %v419 = vld [vmem:[#allocation2 + $0x28] sm:$0x3]
        %420 = vst [vmem:[#allocation4 + $0x10] sm:$0xff] %v415
        %421 = vst [vmem:[#allocation4 + $0x28] sm:$0xff] %v416
        %422 = vst [vmem:[#allocation4 + $0x40] sm:$0xff] %v417
        %423 = vst [vmem:[#allocation4 + $0x58] sm:$0xff] %v418
        %424 = vst [vmem:[#allocation4 + $0x70] sm:$0x3] %v419
        %v425 = vld [vmem:[#allocation4] sm:$0xff]
        %v426 = vld [vmem:[#allocation4 + $0x8] sm:$0xff]
        %v427 = vld [vmem:[#allocation4 + $0x10] sm:$0xff]
        %v428 = vld [vmem:[#allocation4 + $0x18] sm:$0xff]
        %v429 = vld [vmem:[#allocation4 + $0x20] sm:$0xff]
        %v430 = vld [vmem:[#allocation4 + $0x28] sm:$0xff]
        %v431 = vld [vmem:[#allocation4 + $0x30] sm:$0xff]
        %v432 = vld [vmem:[#allocation4 + $0x38] sm:$0xff]
        %v433 = vld [vmem:[#allocation4 + $0x40] sm:$0xff]
        %v434 = vld [vmem:[#allocation4 + $0x48] sm:$0xff]
        %v435 = vld [vmem:[#allocation4 + $0x50] sm:$0xff]
        %v436 = vld [vmem:[#allocation4 + $0x58] sm:$0xff]
        %v437 = vld [vmem:[#allocation4 + $0x60] sm:$0x3]
        %v438 = vld [vmem:[#allocation4 + $0x68] sm:$0x3]
        %v439 = vld [vmem:[#allocation4 + $0x70] sm:$0x3]
        %v440 = vld [vmem:[#allocation11] sm:$0xff]
        %v441 = vld [vmem:[#allocation11 + $0x8] sm:$0xff]
        %v442 = vld [vmem:[#allocation11 + $0x10] sm:$0xff]
        %v443 = vld [vmem:[#allocation11 + $0x18] sm:$0xff]
        %v444 = vld [vmem:[#allocation11 + $0x20] sm:$0xff]
        %v445 = vld [vmem:[#allocation11 + $0x28] sm:$0xff]
        %v446 = vld [vmem:[#allocation11 + $0x30] sm:$0xff]
        %v447 = vld [vmem:[#allocation11 + $0x38] sm:$0xff]
        %v448 = vld [vmem:[#allocation11 + $0x40] sm:$0xff]
        %v449 = vld [vmem:[#allocation11 + $0x48] sm:$0xff]
        %v450 = vld [vmem:[#allocation11 + $0x50] sm:$0xff]
        %v451 = vld [vmem:[#allocation11 + $0x58] sm:$0xff]
        %v452 = vld [vmem:[#allocation11 + $0x60] sm:$0xff]
        %v453 = vld [vmem:[#allocation11 + $0x68] sm:$0xff]
        %v454 = vld [vmem:[#allocation11 + $0x70] sm:$0xff]
        %v455 = vld [vmem:[#allocation11 + $0x78] sm:$0xff]
        %v456 = vld [vmem:[#allocation11 + $0x80] sm:$0xff]
        %v457 = vld [vmem:[#allocation11 + $0x88] sm:$0xff]
        %v458 = vld [vmem:[#allocation11 + $0x90] sm:$0xff]
        %v459 = vld [vmem:[#allocation11 + $0x98] sm:$0xff]
        %v460 = vld [vmem:[#allocation11 + $0xa0] sm:$0xff]
        %v461 = vld [vmem:[#allocation11 + $0xa8] sm:$0xff]
        %v462 = vld [vmem:[#allocation11 + $0xb0] sm:$0xff]
        %v463 = vld [vmem:[#allocation11 + $0xb8] sm:$0xff]
        %v464 = vld [vmem:[#allocation11 + $0xc0] sm:$0xff]
        %v465 = vld [vmem:[#allocation11 + $0xc8] sm:$0xff]
        %v466 = vld [vmem:[#allocation11 + $0xd0] sm:$0xff]
        %v467 = vld [vmem:[#allocation11 + $0xd8] sm:$0xff]
        %v468 = vld [vmem:[#allocation11 + $0xe0] sm:$0xff]
        %v469 = vld [vmem:[#allocation11 + $0xe8] sm:$0xff]
        %v470 = vld [vmem:[#allocation11 + $0xf0] sm:$0xff]
        %v471 = vld [vmem:[#allocation11 + $0xf8] sm:$0xff]
        %v472 = vld [vmem:[#allocation11 + $0x100] sm:$0xff]
        %v473 = vld [vmem:[#allocation11 + $0x108] sm:$0xff]
        %v474 = vld [vmem:[#allocation11 + $0x110] sm:$0xff]
        %v475 = vld [vmem:[#allocation11 + $0x118] sm:$0xff]
        %v476 = vld [vmem:[#allocation11 + $0x120] sm:$0xff]
        %v477 = vld [vmem:[#allocation11 + $0x128] sm:$0xff]
        %v478 = vld [vmem:[#allocation11 + $0x130] sm:$0xff]
        %v479 = vld [vmem:[#allocation11 + $0x138] sm:$0xff]
        %v480 = vld [vmem:[#allocation11 + $0x140] sm:$0xff]
        %v481 = vld [vmem:[#allocation11 + $0x148] sm:$0xff]
        %v482 = vld [vmem:[#allocation11 + $0x150] sm:$0xff]
        %v483 = vld [vmem:[#allocation11 + $0x158] sm:$0xff]
        %v484 = vld [vmem:[#allocation11 + $0x160] sm:$0xff]
        %v485 = vld [vmem:[#allocation11 + $0x168] sm:$0xff]
        %v486 = vld [vmem:[#allocation11 + $0x170] sm:$0xff]
        %v487 = vld [vmem:[#allocation11 + $0x178] sm:$0xff]
        %v488 = vld [vmem:[%s3] sm:$0x1]
        %v490 = vperm.slane %v488, 0
        %492 = vmatpush.msra.mxu0 %v455
        %493 = vmatpush.msra.mxu0 %v454
        %494 = vmatpush.msra.mxu0 %v453
        %495 = vmatpush.msra.mxu0 %v452
        %496 = vmatpush.msra.mxu0 %v451
        %497 = vmatpush.msra.mxu0 %v450
        %498 = vmatpush.msra.mxu0 %v449
        %499 = vmatpush.msra.mxu0 %v448
        %500 = vmatpush.msra.mxu0 %v447
        %501 = vmatpush.msra.mxu0 %v446
        %502 = vmatpush.msra.mxu0 %v445
        %503 = vmatpush.msra.mxu0 %v444
        %504 = vmatpush.msra.mxu0 %v443
        %505 = vmatpush.msra.mxu0 %v442
        %506 = vmatpush.msra.mxu0 %v441
        %507 = vmatpush.msra.mxu0 %v440
        %508 = vmatmul.f32.gmra.mxu0 %v425
        %v509 = vpop.f32.mrf.mxu0
        %v510 = vadd.f32 %v490, %v509
        %511 = vmatmul.f32.gmra.mxu0 %v428
        %v512 = vpop.f32.mrf.mxu0
        %v513 = vadd.f32 %v490, %v512
        %514 = vmatmul.f32.gmra.mxu0 %v431
        %v515 = vpop.f32.mrf.mxu0
        %v516 = vadd.f32 %v490, %v515
        %517 = vmatmul.f32.gmra.mxu0 %v434
        %v518 = vpop.f32.mrf.mxu0
        %v519 = vadd.f32 %v490, %v518
        %520 = vmatmul.f32.gmra.mxu0 %v437
        %v521 = vpop.f32.mrf.mxu0
        %v522 = vadd.f32 %v490, %v521
        %523 = vdwg.mxu0
        %524 = vmatpush.msra.mxu0 %v471
        %525 = vmatpush.msra.mxu0 %v470
        %526 = vmatpush.msra.mxu0 %v469
        %527 = vmatpush.msra.mxu0 %v468
        %528 = vmatpush.msra.mxu0 %v467
        %529 = vmatpush.msra.mxu0 %v466
        %530 = vmatpush.msra.mxu0 %v465
        %531 = vmatpush.msra.mxu0 %v464
        %532 = vmatpush.msra.mxu0 %v463
        %533 = vmatpush.msra.mxu0 %v462
        %534 = vmatpush.msra.mxu0 %v461
        %535 = vmatpush.msra.mxu0 %v460
        %536 = vmatpush.msra.mxu0 %v459
        %537 = vmatpush.msra.mxu0 %v458
        %538 = vmatpush.msra.mxu0 %v457
        %539 = vmatpush.msra.mxu0 %v456
        %540 = vmatmul.f32.gmra.mxu0 %v426
        %v541 = vpop.f32.mrf.mxu0
        %v542 = vadd.f32 %v510, %v541
        %543 = vmatmul.f32.gmra.mxu0 %v429
        %v544 = vpop.f32.mrf.mxu0
        %v545 = vadd.f32 %v513, %v544
        %546 = vmatmul.f32.gmra.mxu0 %v432
        %v547 = vpop.f32.mrf.mxu0
        %v548 = vadd.f32 %v516, %v547
        %549 = vmatmul.f32.gmra.mxu0 %v435
        %v550 = vpop.f32.mrf.mxu0
        %v551 = vadd.f32 %v519, %v550
        %552 = vmatmul.f32.gmra.mxu0 %v438
        %v553 = vpop.f32.mrf.mxu0
        %v554 = vadd.f32 %v522, %v553
        %555 = vdwg.mxu0
        %556 = vmatpush.msra.mxu0 %v487
        %557 = vmatpush.msra.mxu0 %v486
        %558 = vmatpush.msra.mxu0 %v485
        %559 = vmatpush.msra.mxu0 %v484
        %560 = vmatpush.msra.mxu0 %v483
        %561 = vmatpush.msra.mxu0 %v482
        %562 = vmatpush.msra.mxu0 %v481
        %563 = vmatpush.msra.mxu0 %v480
        %564 = vmatpush.msra.mxu0 %v479
        %565 = vmatpush.msra.mxu0 %v478
        %566 = vmatpush.msra.mxu0 %v477
        %567 = vmatpush.msra.mxu0 %v476
        %568 = vmatpush.msra.mxu0 %v475
        %569 = vmatpush.msra.mxu0 %v474
        %570 = vmatpush.msra.mxu0 %v473
        %571 = vmatpush.msra.mxu0 %v472
        %572 = vmatmul.f32.gmra.mxu0 %v427
        %v573 = vpop.f32.mrf.mxu0
        %v574 = vadd.f32 %v542, %v573
        %575 = vmatmul.f32.gmra.mxu0 %v430
        %v576 = vpop.f32.mrf.mxu0
        %v577 = vadd.f32 %v545, %v576
        %578 = vmatmul.f32.gmra.mxu0 %v433
        %v579 = vpop.f32.mrf.mxu0
        %v580 = vadd.f32 %v548, %v579
        %581 = vmatmul.f32.gmra.mxu0 %v436
        %v582 = vpop.f32.mrf.mxu0
        %v583 = vadd.f32 %v551, %v582
        %584 = vmatmul.f32.gmra.mxu0 %v439
        %v585 = vpop.f32.mrf.mxu0
        %v586 = vadd.f32 %v554, %v585
        %587 = vdwg.mxu0
        %s588 = smul.u32 %s31, 32
        %s589 = ssub.s32 %s588, 1
        %v590 = vlaneseq
        %v591 = vshrl.u32 %v590, 7
        %v592 = vadd.s32 %v591, 8
        %v593 = vadd.s32 %v591, 16
        %v594 = vadd.s32 %v591, 24
        %v595 = vadd.s32 %v591, 32
        %v596 = vstv %s589
        %v597 = vadd.s32 %v596, %v591
        %v598 = vadd.s32 %v596, %v592
        %v599 = vadd.s32 %v596, %v593
        %v600 = vadd.s32 %v596, %v594
        %v601 = vadd.s32 %v596, %v595
        %vm602 = vcmp.ge.s32.totalorder %v597, 0
        %vm603 = vcmp.ge.s32.totalorder %v598, 0
        %vm604 = vcmp.ge.s32.totalorder %v599, 0
        %vm605 = vcmp.ge.s32.totalorder %v600, 0
        %vm606 = vcmp.ge.s32.totalorder %v601, 0
        %vm607 = vcmp.lt.s32.totalorder %v597, 100
        %vm608 = vcmp.lt.s32.totalorder %v598, 100
        %vm609 = vcmp.lt.s32.totalorder %v599, 100
        %vm610 = vcmp.lt.s32.totalorder %v600, 100
        %vm611 = vcmp.lt.s32.totalorder %v601, 100
        %vm612 = vmand %vm602, %vm607
        %vm613 = vmand %vm603, %vm608
        %vm614 = vmand %vm604, %vm609
        %vm615 = vmand %vm605, %vm610
        %vm616 = vmand %vm606, %vm611
        %vm617 = vcmp.ge.f32.partialorder %v574, 0.0
        %vm618 = vcmp.ge.f32.partialorder %v577, 0.0
        %vm619 = vcmp.ge.f32.partialorder %v580, 0.0
        %vm620 = vcmp.ge.f32.partialorder %v583, 0.0
        %vm621 = vcmp.ge.f32.partialorder %v586, 0.0
        %v622 = vmul.f32 %v574, 0.1
        %v623 = vmul.f32 %v577, 0.1
        %v624 = vmul.f32 %v580, 0.1
        %v625 = vmul.f32 %v583, 0.1
        %v626 = vmul.f32 %v586, 0.1
        %v627 = vsel %vm617, %v574, %v622
        %v628 = vsel %vm618, %v577, %v623
        %v629 = vsel %vm619, %v580, %v624
        %v630 = vsel %vm620, %v583, %v625
        %v631 = vsel %vm621, %v586, %v626
        %v632 = vsel %vm612, 1, 0
        %v633 = vsel %vm613, 1, 0
        %v634 = vsel %vm614, 1, 0
        %v635 = vsel %vm615, 1, 0
        %v636 = vsel %vm616, 1, 0
        %vm637 = vcmp.eq.s32.totalorder %v632, 1
        %vm638 = vcmp.eq.s32.totalorder %v633, 1
        %vm639 = vcmp.eq.s32.totalorder %v634, 1
        %vm640 = vcmp.eq.s32.totalorder %v635, 1
        %vm641 = vcmp.eq.s32.totalorder %v636, 1
        %v642 = vsel %vm637, %v627, 0.0
        %v643 = vsel %vm638, %v628, 0.0
        %v644 = vsel %vm639, %v629, 0.0
        %v645 = vsel %vm640, %v630, 0.0
        %v646 = vsel %vm641, %v631, 0.0
        %647 = vst [vmem:[#allocation3] sm:$0xff] %v642
        %648 = vst [vmem:[#allocation3 + $0x8] sm:$0xff] %v643
        %649 = vst [vmem:[#allocation3 + $0x10] sm:$0xff] %v644
        %650 = vst [vmem:[#allocation3 + $0x18] sm:$0xff] %v645
        %651 = vst [vmem:[#allocation3 + $0x20] sm:$0x3] %v646
        %v652 = vld [vmem:[#allocation3] sm:$0xff]
        %v653 = vld [vmem:[#allocation3 + $0x8] sm:$0xff]
        %v654 = vld [vmem:[#allocation3 + $0x10] sm:$0xff]
        %v655 = vld [vmem:[#allocation3 + $0x18] sm:$0xff]
        %656 = vst [vmem:[#allocation5] sm:$0xff] %v652
        %657 = vst [vmem:[#allocation5 + $0x18] sm:$0xff] %v653
        %658 = vst [vmem:[#allocation5 + $0x30] sm:$0xff] %v654
        %659 = vst [vmem:[#allocation5 + $0x48] sm:$0xff] %v655
        %v660 = vld [vmem:[#allocation3 + $0x1] sm:$0xff]
        %v661 = vld [vmem:[#allocation3 + $0x9] sm:$0xff]
        %v662 = vld [vmem:[#allocation3 + $0x11] sm:$0xff]
        %v663 = vld [vmem:[#allocation3 + $0x19] sm:$0xff]
        %664 = vst [vmem:[#allocation5 + $0x8] sm:$0xff] %v660
        %665 = vst [vmem:[#allocation5 + $0x20] sm:$0xff] %v661
        %666 = vst [vmem:[#allocation5 + $0x38] sm:$0xff] %v662
        %667 = vst [vmem:[#allocation5 + $0x50] sm:$0xff] %v663
        %v668 = vld [vmem:[#allocation3 + $0x2] sm:$0xff]
        %v669 = vld [vmem:[#allocation3 + $0xa] sm:$0xff]
        %v670 = vld [vmem:[#allocation3 + $0x12] sm:$0xff]
        %v671 = vld [vmem:[#allocation3 + $0x1a] sm:$0xff]
        %672 = vst [vmem:[#allocation5 + $0x10] sm:$0xff] %v668
        %673 = vst [vmem:[#allocation5 + $0x28] sm:$0xff] %v669
        %674 = vst [vmem:[#allocation5 + $0x40] sm:$0xff] %v670
        %675 = vst [vmem:[#allocation5 + $0x58] sm:$0xff] %v671
        %v676 = vld [vmem:[#allocation5] sm:$0xff]
        %v677 = vld [vmem:[#allocation5 + $0x8] sm:$0xff]
        %v678 = vld [vmem:[#allocation5 + $0x10] sm:$0xff]
        %v679 = vld [vmem:[#allocation5 + $0x18] sm:$0xff]
        %v680 = vld [vmem:[#allocation5 + $0x20] sm:$0xff]
        %v681 = vld [vmem:[#allocation5 + $0x28] sm:$0xff]
        %v682 = vld [vmem:[#allocation5 + $0x30] sm:$0xff]
        %v683 = vld [vmem:[#allocation5 + $0x38] sm:$0xff]
        %v684 = vld [vmem:[#allocation5 + $0x40] sm:$0xff]
        %v685 = vld [vmem:[#allocation5 + $0x48] sm:$0xff]
        %v686 = vld [vmem:[#allocation5 + $0x50] sm:$0xff]
        %v687 = vld [vmem:[#allocation5 + $0x58] sm:$0xff]
        %v688 = vld [vmem:[#allocation12] sm:$0xff]
        %v689 = vld [vmem:[#allocation12 + $0x8] sm:$0xff]
        %v690 = vld [vmem:[#allocation12 + $0x10] sm:$0xff]
        %v691 = vld [vmem:[#allocation12 + $0x18] sm:$0xff]
        %v692 = vld [vmem:[#allocation12 + $0x20] sm:$0xff]
        %v693 = vld [vmem:[#allocation12 + $0x28] sm:$0xff]
        %v694 = vld [vmem:[#allocation12 + $0x30] sm:$0xff]
        %v695 = vld [vmem:[#allocation12 + $0x38] sm:$0xff]
        %v696 = vld [vmem:[#allocation12 + $0x40] sm:$0xff]
        %v697 = vld [vmem:[#allocation12 + $0x48] sm:$0xff]
        %v698 = vld [vmem:[#allocation12 + $0x50] sm:$0xff]
        %v699 = vld [vmem:[#allocation12 + $0x58] sm:$0xff]
        %v700 = vld [vmem:[#allocation12 + $0x60] sm:$0xff]
        %v701 = vld [vmem:[#allocation12 + $0x68] sm:$0xff]
        %v702 = vld [vmem:[#allocation12 + $0x70] sm:$0xff]
        %v703 = vld [vmem:[#allocation12 + $0x78] sm:$0xff]
        %v704 = vld [vmem:[#allocation12 + $0x80] sm:$0xff]
        %v705 = vld [vmem:[#allocation12 + $0x88] sm:$0xff]
        %v706 = vld [vmem:[#allocation12 + $0x90] sm:$0xff]
        %v707 = vld [vmem:[#allocation12 + $0x98] sm:$0xff]
        %v708 = vld [vmem:[#allocation12 + $0xa0] sm:$0xff]
        %v709 = vld [vmem:[#allocation12 + $0xa8] sm:$0xff]
        %v710 = vld [vmem:[#allocation12 + $0xb0] sm:$0xff]
        %v711 = vld [vmem:[#allocation12 + $0xb8] sm:$0xff]
        %v712 = vld [vmem:[#allocation12 + $0xc0] sm:$0xff]
        %v713 = vld [vmem:[#allocation12 + $0xc8] sm:$0xff]
        %v714 = vld [vmem:[#allocation12 + $0xd0] sm:$0xff]
        %v715 = vld [vmem:[#allocation12 + $0xd8] sm:$0xff]
        %v716 = vld [vmem:[#allocation12 + $0xe0] sm:$0xff]
        %v717 = vld [vmem:[#allocation12 + $0xe8] sm:$0xff]
        %v718 = vld [vmem:[#allocation12 + $0xf0] sm:$0xff]
        %v719 = vld [vmem:[#allocation12 + $0xf8] sm:$0xff]
        %v720 = vld [vmem:[#allocation12 + $0x100] sm:$0xff]
        %v721 = vld [vmem:[#allocation12 + $0x108] sm:$0xff]
        %v722 = vld [vmem:[#allocation12 + $0x110] sm:$0xff]
        %v723 = vld [vmem:[#allocation12 + $0x118] sm:$0xff]
        %v724 = vld [vmem:[#allocation12 + $0x120] sm:$0xff]
        %v725 = vld [vmem:[#allocation12 + $0x128] sm:$0xff]
        %v726 = vld [vmem:[#allocation12 + $0x130] sm:$0xff]
        %v727 = vld [vmem:[#allocation12 + $0x138] sm:$0xff]
        %v728 = vld [vmem:[#allocation12 + $0x140] sm:$0xff]
        %v729 = vld [vmem:[#allocation12 + $0x148] sm:$0xff]
        %v730 = vld [vmem:[#allocation12 + $0x150] sm:$0xff]
        %v731 = vld [vmem:[#allocation12 + $0x158] sm:$0xff]
        %v732 = vld [vmem:[#allocation12 + $0x160] sm:$0xff]
        %v733 = vld [vmem:[#allocation12 + $0x168] sm:$0xff]
        %v734 = vld [vmem:[#allocation12 + $0x170] sm:$0xff]
        %v735 = vld [vmem:[#allocation12 + $0x178] sm:$0xff]
        %v736 = vld [vmem:[%s5] sm:$0x1]
        %v738 = vperm.slane %v736, 0
        %740 = vmatpush.msra.mxu0 %v703
        %741 = vmatpush.msra.mxu0 %v702
        %742 = vmatpush.msra.mxu0 %v701
        %743 = vmatpush.msra.mxu0 %v700
        %744 = vmatpush.msra.mxu0 %v699
        %745 = vmatpush.msra.mxu0 %v698
        %746 = vmatpush.msra.mxu0 %v697
        %747 = vmatpush.msra.mxu0 %v696
        %748 = vmatpush.msra.mxu0 %v695
        %749 = vmatpush.msra.mxu0 %v694
        %750 = vmatpush.msra.mxu0 %v693
        %751 = vmatpush.msra.mxu0 %v692
        %752 = vmatpush.msra.mxu0 %v691
        %753 = vmatpush.msra.mxu0 %v690
        %754 = vmatpush.msra.mxu0 %v689
        %755 = vmatpush.msra.mxu0 %v688
        %756 = vmatmul.f32.gmra.mxu0 %v676
        %v757 = vpop.f32.mrf.mxu0
        %v758 = vadd.f32 %v738, %v757
        %759 = vmatmul.f32.gmra.mxu0 %v679
        %v760 = vpop.f32.mrf.mxu0
        %v761 = vadd.f32 %v738, %v760
        %762 = vmatmul.f32.gmra.mxu0 %v682
        %v763 = vpop.f32.mrf.mxu0
        %v764 = vadd.f32 %v738, %v763
        %765 = vmatmul.f32.gmra.mxu0 %v685
        %v766 = vpop.f32.mrf.mxu0
        %v767 = vadd.f32 %v738, %v766
        %768 = vdwg.mxu0
        %769 = vmatpush.msra.mxu0 %v719
        %770 = vmatpush.msra.mxu0 %v718
        %771 = vmatpush.msra.mxu0 %v717
        %772 = vmatpush.msra.mxu0 %v716
        %773 = vmatpush.msra.mxu0 %v715
        %774 = vmatpush.msra.mxu0 %v714
        %775 = vmatpush.msra.mxu0 %v713
        %776 = vmatpush.msra.mxu0 %v712
        %777 = vmatpush.msra.mxu0 %v711
        %778 = vmatpush.msra.mxu0 %v710
        %779 = vmatpush.msra.mxu0 %v709
        %780 = vmatpush.msra.mxu0 %v708
        %781 = vmatpush.msra.mxu0 %v707
        %782 = vmatpush.msra.mxu0 %v706
        %783 = vmatpush.msra.mxu0 %v705
        %784 = vmatpush.msra.mxu0 %v704
        %785 = vmatmul.f32.gmra.mxu0 %v677
        %v786 = vpop.f32.mrf.mxu0
        %v787 = vadd.f32 %v758, %v786
        %788 = vmatmul.f32.gmra.mxu0 %v680
        %v789 = vpop.f32.mrf.mxu0
        %v790 = vadd.f32 %v761, %v789
        %791 = vmatmul.f32.gmra.mxu0 %v683
        %v792 = vpop.f32.mrf.mxu0
        %v793 = vadd.f32 %v764, %v792
        %794 = vmatmul.f32.gmra.mxu0 %v686
        %v795 = vpop.f32.mrf.mxu0
        %v796 = vadd.f32 %v767, %v795
        %797 = vdwg.mxu0
        %798 = vmatpush.msra.mxu0 %v735
        %799 = vmatpush.msra.mxu0 %v734
        %800 = vmatpush.msra.mxu0 %v733
        %801 = vmatpush.msra.mxu0 %v732
        %802 = vmatpush.msra.mxu0 %v731
        %803 = vmatpush.msra.mxu0 %v730
        %804 = vmatpush.msra.mxu0 %v729
        %805 = vmatpush.msra.mxu0 %v728
        %806 = vmatpush.msra.mxu0 %v727
        %807 = vmatpush.msra.mxu0 %v726
        %808 = vmatpush.msra.mxu0 %v725
        %809 = vmatpush.msra.mxu0 %v724
        %810 = vmatpush.msra.mxu0 %v723
        %811 = vmatpush.msra.mxu0 %v722
        %812 = vmatpush.msra.mxu0 %v721
        %813 = vmatpush.msra.mxu0 %v720
        %814 = vmatmul.f32.gmra.mxu0 %v678
        %v815 = vpop.f32.mrf.mxu0
        %v816 = vadd.f32 %v787, %v815
        %817 = vmatmul.f32.gmra.mxu0 %v681
        %v818 = vpop.f32.mrf.mxu0
        %v819 = vadd.f32 %v790, %v818
        %820 = vmatmul.f32.gmra.mxu0 %v684
        %v821 = vpop.f32.mrf.mxu0
        %v822 = vadd.f32 %v793, %v821
        %823 = vmatmul.f32.gmra.mxu0 %v687
        %v824 = vpop.f32.mrf.mxu0
        %v825 = vadd.f32 %v796, %v824
        %826 = vdwg.mxu0
        %v827 = vadd.f32 %v816, %v371
        %v828 = vadd.f32 %v819, %v372
        %v829 = vadd.f32 %v822, %v373
        %v830 = vadd.f32 %v825, %v374
        %v831 = vstv %s588
        %v832 = vadd.s32 %v831, %v591
        %v833 = vadd.s32 %v831, %v592
        %v834 = vadd.s32 %v831, %v593
        %v835 = vadd.s32 %v831, %v594
        %vm836 = vcmp.lt.s32.totalorder %v832, 100
        %vm837 = vcmp.lt.s32.totalorder %v833, 100
        %vm838 = vcmp.lt.s32.totalorder %v834, 100
        %vm839 = vcmp.lt.s32.totalorder %v835, 100
        %v840 = vsel %vm836, 1, 0
        %v841 = vsel %vm837, 1, 0
        %v842 = vsel %vm838, 1, 0
        %v843 = vsel %vm839, 1, 0
        %vm844 = vcmp.eq.s32.totalorder %v840, 1
        %vm845 = vcmp.eq.s32.totalorder %v841, 1
        %vm846 = vcmp.eq.s32.totalorder %v842, 1
        %vm847 = vcmp.eq.s32.totalorder %v843, 1
        %v848 = vsel %vm844, %v827, 0.0
        %v849 = vsel %vm845, %v828, 0.0
        %v850 = vsel %vm846, %v829, 0.0
        %v851 = vsel %vm847, %v830, 0.0
        %852 = vst [vmem:[%s368] sm:$0xff] %v848
        %853 = vst [vmem:[%s368 + $0x8] sm:$0xff] %v849
        %854 = vst [vmem:[%s368 + $0x10] sm:$0xff] %v850
        %855 = vst [vmem:[%s368 + $0x18] sm:$0xff] %v851
        %s856 = sand.u32 %s189, 1
        %s857 = scalar_lea.sflag [#allocation8], %s856
        %s858 = sand.u32 %s189, 1
        %s859 = smul.addr %s858, 32
        %s860 = scalar_lea.vmem [#allocation14], %s859
        // Predicated region
        $region61: #{tpu_custom_call.1} parent=43 // pred_check
          %p861 = pneg %p199
        $region62: #{tpu_custom_call.1} parent=43 // pred_check_branch
          %863 = sbr.rel (%p861) target = $region64
        $region63: #{tpu_custom_call.1} parent=43 // pred_region
          %s864 = smul.u32 4, %s31
          %866 = vsyncadd %s857, 0
          %s867 = smul.addr %s32, 16
          %s868 = sadd.s32 %s864, %s867
          %s869 = smul.addr %s868, 8
          %s870 = scalar_lea.hbm %s6, %s869
          %s871 = sshll.u32 %s860, 4
          %s872 = int_to_ptr.vmem [resolvable:$true] %s871
          %s873 = sshll.u32 %s870, 4
          %s874 = int_to_ptr.hbm [resolvable:$true] %s873
          %879 = dma.vmem_to_hbm [thread:$0]  %s872, 512, %s874, %s857, 128, 128, 8
        $region64: #{tpu_custom_call.1} parent=43 // pred_fallthru
          _
      $region44: #{tpu_custom_call.1} parent=5 // pred_fallthru
        _
      %p880 = scmp.le.s32.totalorder 2, %s22
      // Predicated region
      $region65: #{tpu_custom_call.1} parent=5 // pred_check
        %p881 = pneg %p880
      $region66: #{tpu_custom_call.1} parent=5 // pred_check_branch
        %883 = sbr.rel (%p881) target = $region68
      $region67: #{tpu_custom_call.1} parent=5 // pred_region
        %s884 = ssub.s32 %s22, 2
        // Predicated region
        $region69: #{tpu_custom_call.1} parent=67 // pred_check
          %p885 = pneg %p205
        $region70: #{tpu_custom_call.1} parent=67 // pred_check_branch
          %887 = sbr.rel (%p885) target = $region72
        $region71: #{tpu_custom_call.1} parent=67 // pred_region
          %s888 = sand.u32 %s190, 1
          %s889 = scalar_lea.sflag [#allocation8], %s888
          %s890 = sand.u32 %s190, 1
          %s891 = smul.addr %s890, 32
          %s892 = scalar_lea.vmem [#allocation14], %s891
          %894 = dma.done %s889, 512
        $region72: #{tpu_custom_call.1} parent=67 // pred_fallthru
          _
      $region68: #{tpu_custom_call.1} parent=5 // pred_fallthru
        _
    $region6: #{tpu_custom_call.1} parent=1 // loop_footer
      %s26 = sadd.s32 1, %s22
    $region7: #{tpu_custom_call.1} parent=1 // loop_footer_branch
      %21 = sbr.rel target = $region3
    $region8: #{tpu_custom_call.1} parent=1 // loop_exit
      _
    %895 = vsyncpa [#allocation7], 1
    %s896 = scalar_lea.sflag [#allocation7], 1
    %897 = vsyncpa %s896, 1
    %898 = vsyncpa [#allocation10], 1
    %s899 = scalar_lea.sflag [#allocation10], 1
    %900 = vsyncpa %s899, 1
    %901 = vsyncpa [#allocation13], 1
    %902 = vsyncpa [#allocation8], 1
    %s903 = scalar_lea.sflag [#allocation8], 1
    %904 = vsyncpa %s903, 1

</llo_original>
